<compile_context>
chip_gen: v7x
topology: tpu7x:2x2x1
jax: 0.10.0
libtpu: 0.0.40
codegen_flags: <defaults>
</compile_context>

<pallas_src>
import functools

import jax
import jax.numpy as jnp
from jax.experimental import pallas as pl
from jax.experimental.pallas import tpu as pltpu


def _round_up(x: int, m: int) -> int:
    return ((x + m - 1) // m) * m


def _pad2(x, rows: int, cols: int):
    return jnp.pad(x, ((0, rows - x.shape[0]), (0, cols - x.shape[1])))


def _sage_conv_kernel(a_ref, xs_ref, xt_ref, inv_ref, wl_ref, wr_ref, b_ref,
                      o_ref, acc_ref, *, apply_relu: bool, project_first: bool):
    k = pl.program_id(1)

    @pl.when(k == 0)
    def _init():
        acc_ref[...] = jnp.zeros_like(acc_ref)

    if project_first:
        # acc += A01 @ (x_src @ W_l)  -- accumulator is Dout-wide (Dout < Din)
        proj = jnp.dot(xs_ref[...], wl_ref[...],
                       preferred_element_type=jnp.float32)
        acc_ref[...] += jnp.dot(a_ref[...], proj.astype(jnp.bfloat16),
                                preferred_element_type=jnp.float32)
    else:
        # acc += A01 @ x_src          -- accumulator is Din-wide (Din <= Dout)
        acc_ref[...] += jnp.dot(a_ref[...], xs_ref[...],
                                preferred_element_type=jnp.float32)

    @pl.when(k == pl.num_programs(1) - 1)
    def _finalize():
        # mean aggregation: scale accumulated sums by 1/deg (per target row)
        agg = acc_ref[...] * inv_ref[...]
        if project_first:
            out = agg
        else:
            out = jnp.dot(agg.astype(jnp.bfloat16), wl_ref[...],
                          preferred_element_type=jnp.float32)
        # SAGEConv: lin_l(mean_aggr(x_j)) + lin_r(x_target); bias lives on lin_l.
        out += jnp.dot(xt_ref[...], wr_ref[...],
                       preferred_element_type=jnp.float32)
        out += b_ref[...]
        if apply_relu:
            out = jnp.maximum(out, 0.0)
        o_ref[...] = out.astype(o_ref.dtype)


def sage_conv(A01, inv_deg, x_src, x_tgt, w_l, w_r, b, *, apply_relu: bool):
    """One SAGEConv layer.

    A01:     (T, S) 0/1 edge-count matrix (target i <- source j)
    inv_deg: (T, 1) 1/max(deg, 1)
    x_src:   (S, Din), x_tgt: (T, Din)
    w_l/w_r: (Din, Dout), b: (1, Dout)
    Returns (T, Dout) float32.
    """
    T, S = A01.shape
    Din, Dout = w_l.shape
    project_first = Dout < Din  # make the big (T,S) contraction min-width

    # Tile sizes: rows multiple of 8, lanes multiple of 128 (or full extent).
    tm = min(256, _round_up(T, 8))
    tk = min(512, _round_up(S, 8))
    T_p, S_p = _round_up(T, tm), _round_up(S, tk)
    Din_p, Dout_p = _round_up(Din, 128), _round_up(Dout, 128)

    A_p = _pad2(A01, T_p, S_p).astype(jnp.bfloat16)
    xs_p = _pad2(x_src, S_p, Din_p).astype(jnp.bfloat16)
    xt_p = _pad2(x_tgt, T_p, Din_p).astype(jnp.bfloat16)
    inv_p = _pad2(inv_deg, T_p, 1).astype(jnp.float32)
    wl_p = _pad2(w_l, Din_p, Dout_p).astype(jnp.bfloat16)
    wr_p = _pad2(w_r, Din_p, Dout_p).astype(jnp.bfloat16)
    b_p = _pad2(b, 1, Dout_p).astype(jnp.float32)

    grid = (T_p // tm, S_p // tk)
    acc_cols = Dout_p if project_first else Din_p

    kernel = functools.partial(_sage_conv_kernel,
                               apply_relu=apply_relu,
                               project_first=project_first)

    out_p = pl.pallas_call(
        kernel,
        out_shape=jax.ShapeDtypeStruct((T_p, Dout_p), jnp.float32),
        grid_spec=pltpu.PrefetchScalarGridSpec(
            num_scalar_prefetch=0,
            grid=grid,
            in_specs=[
                pl.BlockSpec((tm, tk), lambda i, k: (i, k)),          # A (0/1)
                pl.BlockSpec((tk, Din_p), lambda i, k: (k, 0)),       # x_src
                pl.BlockSpec((tm, Din_p), lambda i, k: (i, 0)),       # x_tgt
                pl.BlockSpec((tm, 1), lambda i, k: (i, 0)),           # 1/deg
                pl.BlockSpec((Din_p, Dout_p), lambda i, k: (0, 0)),   # W_l
                pl.BlockSpec((Din_p, Dout_p), lambda i, k: (0, 0)),   # W_r
                pl.BlockSpec((1, Dout_p), lambda i, k: (0, 0)),       # bias
            ],
            out_specs=pl.BlockSpec((tm, Dout_p), lambda i, k: (i, 0)),
            scratch_shapes=[pltpu.VMEM((tm, acc_cols), jnp.float32)],
        ),
        compiler_params=pltpu.CompilerParams(
            dimension_semantics=("parallel", "arbitrary"),
            vmem_limit_bytes=48 * 1024 * 1024),   # within v7x's 64 MiB physical
    )(A_p, xs_p, xt_p, inv_p, wl_p, wr_p, b_p)

    return out_p[:T, :Dout]


def build_aggregation(edge_index, num_src, num_tgt):
    """0/1 edge-count matrix + 1/deg vector from PyG-style edge_index [2, E]
    (row 0 = source j, row 1 = target i; messages flow j -> i)."""
    src, tgt = edge_index[0], edge_index[1]
    A01 = jnp.zeros((num_tgt, num_src), jnp.float32).at[tgt, src].add(1.0)
    deg = A01.sum(axis=1, keepdims=True)
    inv_deg = 1.0 / jnp.maximum(deg, 1.0)  # zero-degree targets aggregate to 0
    return A01, inv_deg


def sage_forward(params, x, adjs):
    """Mirror of Sage.forward(x, adjs) with adjs = [(edge_index, size), ...]."""
    (ei1, size1), (ei2, size2) = adjs

    A1, inv1 = build_aggregation(ei1, size1[0], size1[1])
    out = sage_conv(A1, inv1, x, x[: size1[1]],
                    params["w1_l"], params["w1_r"], params["b1"],
                    apply_relu=True)
    # TODO(synk): F.dropout(p=0.5, training=self.training) implemented in
    # inference mode (identity); training-mode random mask omitted.

    A2, inv2 = build_aggregation(ei2, size2[0], size2[1])
    out = sage_conv(A2, inv2, out, out[: size2[1]],
                    params["w2_l"], params["w2_r"], params["b2"],
                    apply_relu=False)
    return out


def init_params(key, dim_input, dim_hidden, dim_output):
    k = jax.random.split(key, 6)
    s1 = 1.0 / jnp.sqrt(jnp.float32(dim_input))
    s2 = 1.0 / jnp.sqrt(jnp.float32(dim_hidden))
    return {
        # layer 1: SAGEConv(dim_input, dim_hidden)
        "w1_l": jax.random.uniform(k[0], (dim_input, dim_hidden), jnp.float32, -s1, s1),
        "w1_r": jax.random.uniform(k[1], (dim_input, dim_hidden), jnp.float32, -s1, s1),
        "b1": jax.random.uniform(k[2], (1, dim_hidden), jnp.float32, -s1, s1),
        # layer 2: SAGEConv(dim_hidden, dim_output)
        "w2_l": jax.random.uniform(k[3], (dim_hidden, dim_output), jnp.float32, -s2, s2),
        "w2_r": jax.random.uniform(k[4], (dim_hidden, dim_output), jnp.float32, -s2, s2),
        "b2": jax.random.uniform(k[5], (1, dim_output), jnp.float32, -s2, s2),
    }


if __name__ == "__main__":
    dim_input, dim_hidden, dim_output = 32, 64, 16
    N, T1, T2 = 64, 32, 16          # sampled subgraph sizes: size1=(N,T1), size2=(T1,T2)
    E1, E2 = 256, 128               # number of sampled edges per hop

    key = jax.random.PRNGKey(0)
    k = jax.random.split(key, 6)

    x = jax.random.normal(k[0], (N, dim_input), jnp.float32)

    ei1 = jnp.stack([
        jax.random.randint(k[1], (E1,), 0, N),    # sources
        jax.random.randint(k[2], (E1,), 0, T1),   # targets
    ]).astype(jnp.int32)
    ei2 = jnp.stack([
        jax.random.randint(k[3], (E2,), 0, T1),
        jax.random.randint(k[4], (E2,), 0, T2),
    ]).astype(jnp.int32)

    adjs = [(ei1, (N, T1)), (ei2, (T1, T2))]
    params = init_params(k[5], dim_input, dim_hidden, dim_output)

    out = sage_forward(params, x, adjs)
    jax.block_until_ready(out)
    assert out.shape == (T2, dim_output), out.shape
    assert bool(jnp.all(jnp.isfinite(out)))
    print("KERNEL_OK")
</pallas_src>

<mosaic_0001>
module attributes {stable_mosaic.version = 11 : i64} {
  func.func @_sage_conv_kernel(%arg0: i32, %arg1: i32, %arg2: memref<32x64xbf16, #tpu.memory_space<vmem>>, %arg3: memref<64x128xbf16, #tpu.memory_space<vmem>>, %arg4: memref<32x128xbf16, #tpu.memory_space<vmem>>, %arg5: memref<32x1xf32, #tpu.memory_space<vmem>>, %arg6: memref<128x128xbf16, #tpu.memory_space<vmem>>, %arg7: memref<128x128xbf16, #tpu.memory_space<vmem>>, %arg8: memref<1x128xf32, #tpu.memory_space<vmem>>, %arg9: memref<32x128xf32, #tpu.memory_space<vmem>>, %arg10: memref<32x128xf32, #tpu.memory_space<vmem>>) attributes {dimension_semantics = [#tpu.dimension_semantics<parallel>, #tpu.dimension_semantics<arbitrary>], iteration_bounds = array<i64: 1, 1>, scalar_prefetch = 0 : i64, scratch_operands = 1 : i64, tpu.core_type = #tpu.core_type<tc>, window_params = [{transform_indices = @transform_0, window_bounds = array<i64: 32, 64>}, {transform_indices = @transform_1, window_bounds = array<i64: 64, 128>}, {transform_indices = @transform_2, window_bounds = array<i64: 32, 128>}, {transform_indices = @transform_3, window_bounds = array<i64: 32, 1>}, {pipeline_mode = #tpu.pipeline_mode<synchronous>, transform_indices = @transform_4, window_bounds = array<i64: 128, 128>}, {pipeline_mode = #tpu.pipeline_mode<synchronous>, transform_indices = @transform_5, window_bounds = array<i64: 128, 128>}, {pipeline_mode = #tpu.pipeline_mode<synchronous>, transform_indices = @transform_6, window_bounds = array<i64: 1, 128>}, {transform_indices = @transform_7, window_bounds = array<i64: 32, 128>}]} {
    %c0_i32 = arith.constant 0 : i32
    %0 = arith.cmpi eq, %arg1, %c0_i32 : i32
    %1 = arith.extui %0 : i1 to i32
    %c0_i32_0 = arith.constant 0 : i32
    %2 = arith.cmpi ne, %1, %c0_i32_0 : i32
    scf.if %2 {
      %cst_10 = arith.constant 0.000000e+00 : f32
      %12 = vector.broadcast %cst_10 : f32 to vector<32x128xf32>
      %c0_11 = arith.constant 0 : index
      %c0_12 = arith.constant 0 : index
      %13 = vector.load %arg10[%c0_11, %c0_12] : memref<32x128xf32, #tpu.memory_space<vmem>>, vector<32x128xf32>
      tpu.vector_store %arg10[%c0_11, %c0_12], %12 {strides = array<i32>} : memref<32x128xf32, #tpu.memory_space<vmem>>, vector<32x128xf32>,
    } else {
    }
    %c0 = arith.constant 0 : index
    %c0_1 = arith.constant 0 : index
    %3 = vector.load %arg10[%c0, %c0_1] : memref<32x128xf32, #tpu.memory_space<vmem>>, vector<32x128xf32>
    %c0_2 = arith.constant 0 : index
    %c0_3 = arith.constant 0 : index
    %4 = vector.load %arg2[%c0_2, %c0_3] : memref<32x64xbf16, #tpu.memory_space<vmem>>, vector<32x64xbf16>
    %c0_4 = arith.constant 0 : index
    %c0_5 = arith.constant 0 : index
    %5 = vector.load %arg3[%c0_4, %c0_5] : memref<64x128xbf16, #tpu.memory_space<vmem>>, vector<64x128xbf16>
    %cst = arith.constant dense<0.000000e+00> : vector<32x128xf32>
    %6 = tpu.matmul %4, %5, %cst {dimension_numbers = #tpu.dot_dimension_numbers<[1], [0], [0], [1], [0, 0, 1, 1], [], []>} : vector<32x64xbf16>, vector<64x128xbf16>, vector<32x128xf32> -> vector<32x128xf32>
    %7 = arith.addf %3, %6 : vector<32x128xf32>
    %c0_6 = arith.constant 0 : index
    %c0_7 = arith.constant 0 : index
    %8 = vector.load %arg10[%c0_6, %c0_7] : memref<32x128xf32, #tpu.memory_space<vmem>>, vector<32x128xf32>
    tpu.vector_store %arg10[%c0_6, %c0_7], %7 {strides = array<i32>} : memref<32x128xf32, #tpu.memory_space<vmem>>, vector<32x128xf32>,
    %c0_i32_8 = arith.constant 0 : i32
    %9 = arith.cmpi eq, %arg1, %c0_i32_8 : i32
    %10 = arith.extui %9 : i1 to i32
    %c0_i32_9 = arith.constant 0 : i32
    %11 = arith.cmpi ne, %10, %c0_i32_9 : i32
    scf.if %11 {
      %c0_10 = arith.constant 0 : index
      %c0_11 = arith.constant 0 : index
      %12 = vector.load %arg10[%c0_10, %c0_11] : memref<32x128xf32, #tpu.memory_space<vmem>>, vector<32x128xf32>
      %c0_12 = arith.constant 0 : index
      %c0_13 = arith.constant 0 : index
      %13 = vector.load %arg5[%c0_12, %c0_13] : memref<32x1xf32, #tpu.memory_space<vmem>>, vector<32x1xf32>
      %14 = vector.broadcast %13 : vector<32x1xf32> to vector<32x128xf32>
      %15 = arith.mulf %12, %14 : vector<32x128xf32>
      %16 = arith.truncf %15 : vector<32x128xf32> to vector<32x128xbf16>
      %c0_14 = arith.constant 0 : index
      %c0_15 = arith.constant 0 : index
      %17 = vector.load %arg6[%c0_14, %c0_15] : memref<128x128xbf16, #tpu.memory_space<vmem>>, vector<128x128xbf16>
      %cst_16 = arith.constant dense<0.000000e+00> : vector<32x128xf32>
      %18 = tpu.matmul %16, %17, %cst_16 {dimension_numbers = #tpu.dot_dimension_numbers<[1], [0], [0], [1], [0, 0, 1, 1], [], []>} : vector<32x128xbf16>, vector<128x128xbf16>, vector<32x128xf32> -> vector<32x128xf32>
      %c0_17 = arith.constant 0 : index
      %c0_18 = arith.constant 0 : index
      %19 = vector.load %arg4[%c0_17, %c0_18] : memref<32x128xbf16, #tpu.memory_space<vmem>>, vector<32x128xbf16>
      %c0_19 = arith.constant 0 : index
      %c0_20 = arith.constant 0 : index
      %20 = vector.load %arg7[%c0_19, %c0_20] : memref<128x128xbf16, #tpu.memory_space<vmem>>, vector<128x128xbf16>
      %cst_21 = arith.constant dense<0.000000e+00> : vector<32x128xf32>
      %21 = tpu.matmul %19, %20, %cst_21 {dimension_numbers = #tpu.dot_dimension_numbers<[1], [0], [0], [1], [0, 0, 1, 1], [], []>} : vector<32x128xbf16>, vector<128x128xbf16>, vector<32x128xf32> -> vector<32x128xf32>
      %22 = arith.addf %18, %21 : vector<32x128xf32>
      %c0_22 = arith.constant 0 : index
      %c0_23 = arith.constant 0 : index
      %23 = vector.load %arg8[%c0_22, %c0_23] : memref<1x128xf32, #tpu.memory_space<vmem>>, vector<1x128xf32>
      %24 = vector.broadcast %23 : vector<1x128xf32> to vector<32x128xf32>
      %25 = arith.addf %22, %24 : vector<32x128xf32>
      %cst_24 = arith.constant 0.000000e+00 : f32
      %26 = vector.broadcast %cst_24 : f32 to vector<32x128xf32>
      %27 = arith.maximumf %25, %26 : vector<32x128xf32>
      %c0_25 = arith.constant 0 : index
      %c0_26 = arith.constant 0 : index
      %28 = vector.load %arg9[%c0_25, %c0_26] : memref<32x128xf32, #tpu.memory_space<vmem>>, vector<32x128xf32>
      tpu.vector_store %arg9[%c0_25, %c0_26], %27 {strides = array<i32>} : memref<32x128xf32, #tpu.memory_space<vmem>>, vector<32x128xf32>,
    } else {
    }
    return
  }
  func.func @transform_0(%arg0: i32, %arg1: i32) -> (i32, i32) {
    %c0_i32 = arith.constant 0 : i32
    return %arg0, %arg1 : i32, i32
  }
  func.func @transform_1(%arg0: i32, %arg1: i32) -> (i32, i32) {
    %c0_i32 = arith.constant 0 : i32
    %c0_i32_0 = arith.constant 0 : i32
    return %arg1, %c0_i32 : i32, i32
  }
  func.func @transform_2(%arg0: i32, %arg1: i32) -> (i32, i32) {
    %c0_i32 = arith.constant 0 : i32
    %c0_i32_0 = arith.constant 0 : i32
    return %arg0, %c0_i32 : i32, i32
  }
  func.func @transform_3(%arg0: i32, %arg1: i32) -> (i32, i32) {
    %c0_i32 = arith.constant 0 : i32
    %c0_i32_0 = arith.constant 0 : i32
    return %arg0, %c0_i32 : i32, i32
  }
  func.func @transform_4(%arg0: i32, %arg1: i32) -> (i32, i32) {
    %c0_i32 = arith.constant 0 : i32
    %c0_i32_0 = arith.constant 0 : i32
    %c0_i32_1 = arith.constant 0 : i32
    return %c0_i32, %c0_i32_0 : i32, i32
  }
  func.func @transform_5(%arg0: i32, %arg1: i32) -> (i32, i32) {
    %c0_i32 = arith.constant 0 : i32
    %c0_i32_0 = arith.constant 0 : i32
    %c0_i32_1 = arith.constant 0 : i32
    return %c0_i32, %c0_i32_0 : i32, i32
  }
  func.func @transform_6(%arg0: i32, %arg1: i32) -> (i32, i32) {
    %c0_i32 = arith.constant 0 : i32
    %c0_i32_0 = arith.constant 0 : i32
    %c0_i32_1 = arith.constant 0 : i32
    return %c0_i32, %c0_i32_0 : i32, i32
  }
  func.func @transform_7(%arg0: i32, %arg1: i32) -> (i32, i32) {
    %c0_i32 = arith.constant 0 : i32
    %c0_i32_0 = arith.constant 0 : i32
    return %arg0, %c0_i32 : i32, i32
  }
}

</mosaic_0001>

<llo_original>
// kernel: tpu_custom_call.1
$region0: #{tpu_custom_call.1}
  #allocation0 [shape = 'u32[]', space=smem, size = 0x4, offset = 0x4, fixed_abs, tag = 'smem constant byte address 0x4 - core index']
  #allocation1 [shape = 'u32[144,128]{1,0:T(1,128)}', space=vmem, size = 0x12000, scoped, tag = 'internal scratch']
  #allocation2 [shape = 'f32[32,128]{1,0:T(8,128)}', space=vmem, size = 0x4000, scoped, tag = 'scratch operand']
  %s0 = inlined_call_operand.hbm [shape: bf16[32,64], index: 0, kind: input, shape index: {}]
  %s1 = inlined_call_operand.vmem [shape: bf16[64,128], index: 1, kind: input, shape index: {}]
  %s2 = inlined_call_operand.hbm [shape: bf16[32,128], index: 2, kind: input, shape index: {}]
  %s3 = inlined_call_operand.vmem [shape: f32[32,1], index: 3, kind: input, shape index: {}]
  %s4 = inlined_call_operand.hbm [shape: bf16[128,128], index: 4, kind: input, shape index: {}]
  %s5 = inlined_call_operand.hbm [shape: bf16[128,128], index: 5, kind: input, shape index: {}]
  %s6 = inlined_call_operand.vmem [shape: f32[1,128], index: 6, kind: input, shape index: {}]
  %s7 = inlined_call_operand.hbm [shape: f32[32,128], index: 7, kind: output, shape index: {}]
  %s8 = sld [smem:[#allocation0]]
  $region62: #{tpu_custom_call.1} parent=0
    _
  %s10 = ssub.s32 1, %s8
  %s11 = scalar_select 0, %s10, %s8
  $region1: #{tpu_custom_call.1} parent=0
    #allocation3 [shape = 'u8[8192]{0}', space=vmem, size = 0x2000, scoped, tag = 'input window, operand 0, single buffered']
    #allocation4 [shape = 's32[1]{0}', space=sflag, size = 0x4, scoped, tag = 'scoped memory for tpu_custom_call.1']
    #allocation5 [shape = 's32[1]{0}', space=sflag, size = 0x4, scoped, tag = 'scoped memory for tpu_custom_call.1']
    #allocation6 [shape = 'u8[8192]{0}', space=vmem, size = 0x2000, scoped, tag = 'input window, operand 2, single buffered']
    #allocation7 [shape = 's32[1]{0}', space=sflag, size = 0x4, scoped, tag = 'scoped memory for tpu_custom_call.1']
    #allocation8 [shape = 'u8[32768]{0}', space=vmem, size = 0x8000, scoped, tag = 'input window, operand 4, single buffered']
    #allocation9 [shape = 'u8[32768]{0}', space=vmem, size = 0x8000, scoped, tag = 'input window, operand 5, single buffered']
    #allocation10 [shape = 's32[1]{0}', space=sflag, size = 0x4, scoped, tag = 'scoped memory for tpu_custom_call.1']
    #allocation11 [shape = 'u8[16384]{0}', space=vmem, size = 0x4000, scoped, tag = 'output window, operand 0, single buffered']
    %12 = vsyncpa [#allocation4], 0
    %13 = vsyncpa [#allocation7], 0
    %14 = vsyncpa [#allocation10], 0
    %15 = vsyncpa [#allocation5], 0
    // Predicated region
    $region2: #{tpu_custom_call.1} parent=1 // pred_check
      _
    $region3: #{tpu_custom_call.1} parent=1 // pred_check_branch
      %17 = sbr.rel (0) target = $region5
    $region4: #{tpu_custom_call.1} parent=1 // pred_region
      %s19 = ssub.s32 256, 256
      %20 = vsyncadd [#allocation4], %s19
      %s21 = sshll.u32 [#allocation3], 4
      %s22 = int_to_ptr.vmem [resolvable:$true] %s21
      %27 = dma.hbm_to_vmem [thread:$0]  %s0, 256, %s22, [#allocation4], 64, 64, 4
    $region5: #{tpu_custom_call.1} parent=1 // pred_fallthru
      _
    // Predicated region
    $region6: #{tpu_custom_call.1} parent=1 // pred_check
      _
    $region7: #{tpu_custom_call.1} parent=1 // pred_check_branch
      %29 = sbr.rel (0) target = $region9
    $region8: #{tpu_custom_call.1} parent=1 // pred_region
      _
    $region9: #{tpu_custom_call.1} parent=1 // pred_fallthru
      _
    // Predicated region
    $region10: #{tpu_custom_call.1} parent=1 // pred_check
      _
    $region11: #{tpu_custom_call.1} parent=1 // pred_check_branch
      %31 = sbr.rel (0) target = $region13
    $region12: #{tpu_custom_call.1} parent=1 // pred_region
      %s33 = ssub.s32 256, 256
      %34 = vsyncadd [#allocation7], %s33
      %s35 = sshll.u32 [#allocation6], 4
      %s36 = int_to_ptr.vmem [resolvable:$true] %s35
      %41 = dma.hbm_to_vmem [thread:$0]  %s2, 256, %s36, [#allocation7], 64, 64, 4
    $region13: #{tpu_custom_call.1} parent=1 // pred_fallthru
      _
    // Predicated region
    $region14: #{tpu_custom_call.1} parent=1 // pred_check
      _
    $region15: #{tpu_custom_call.1} parent=1 // pred_check_branch
      %43 = sbr.rel (0) target = $region17
    $region16: #{tpu_custom_call.1} parent=1 // pred_region
      _
    $region17: #{tpu_custom_call.1} parent=1 // pred_fallthru
      _
    // Predicated region
    $region18: #{tpu_custom_call.1} parent=1 // pred_check
      _
    $region19: #{tpu_custom_call.1} parent=1 // pred_check_branch
      %45 = sbr.rel (0) target = $region21
    $region20: #{tpu_custom_call.1} parent=1 // pred_region
      %s47 = ssub.s32 1024, 1024
      %48 = vsyncadd [#allocation7], %s47
      %s49 = sshll.u32 [#allocation8], 4
      %s50 = int_to_ptr.vmem [resolvable:$true] %s49
      %55 = dma.hbm_to_vmem [thread:$0]  %s4, 1024, %s50, [#allocation7], 64, 64, 4
    $region21: #{tpu_custom_call.1} parent=1 // pred_fallthru
      _
    // Predicated region
    $region22: #{tpu_custom_call.1} parent=1 // pred_check
      _
    $region23: #{tpu_custom_call.1} parent=1 // pred_check_branch
      %57 = sbr.rel (0) target = $region25
    $region24: #{tpu_custom_call.1} parent=1 // pred_region
      %s59 = ssub.s32 1024, 1024
      %60 = vsyncadd [#allocation10], %s59
      %s61 = sshll.u32 [#allocation9], 4
      %s62 = int_to_ptr.vmem [resolvable:$true] %s61
      %67 = dma.hbm_to_vmem [thread:$0]  %s5, 1024, %s62, [#allocation10], 64, 64, 4
    $region25: #{tpu_custom_call.1} parent=1 // pred_fallthru
      _
    // Predicated region
    $region26: #{tpu_custom_call.1} parent=1 // pred_check
      _
    $region27: #{tpu_custom_call.1} parent=1 // pred_check_branch
      %69 = sbr.rel (0) target = $region29
    $region28: #{tpu_custom_call.1} parent=1 // pred_region
      _
    $region29: #{tpu_custom_call.1} parent=1 // pred_fallthru
      _
    // Predicated region
    $region30: #{tpu_custom_call.1} parent=1 // pred_check
      _
    $region31: #{tpu_custom_call.1} parent=1 // pred_check_branch
      %71 = sbr.rel (0) target = $region33
    $region32: #{tpu_custom_call.1} parent=1 // pred_region
      %72 = dma.done [#allocation4], 256
    $region33: #{tpu_custom_call.1} parent=1 // pred_fallthru
      _
    // Predicated region
    $region34: #{tpu_custom_call.1} parent=1 // pred_check
      _
    $region35: #{tpu_custom_call.1} parent=1 // pred_check_branch
      %74 = sbr.rel (0) target = $region37
    $region36: #{tpu_custom_call.1} parent=1 // pred_region
      %75 = dma.done [#allocation7], 256
    $region37: #{tpu_custom_call.1} parent=1 // pred_fallthru
      _
    // Predicated region
    $region38: #{tpu_custom_call.1} parent=1 // pred_check
      _
    $region39: #{tpu_custom_call.1} parent=1 // pred_check_branch
      %77 = sbr.rel (0) target = $region41
    $region40: #{tpu_custom_call.1} parent=1 // pred_region
      %78 = dma.done [#allocation7], 1024
    $region41: #{tpu_custom_call.1} parent=1 // pred_fallthru
      _
    // Predicated region
    $region42: #{tpu_custom_call.1} parent=1 // pred_check
      _
    $region43: #{tpu_custom_call.1} parent=1 // pred_check_branch
      %80 = sbr.rel (0) target = $region45
    $region44: #{tpu_custom_call.1} parent=1 // pred_region
      %81 = dma.done [#allocation10], 1024
    $region45: #{tpu_custom_call.1} parent=1 // pred_fallthru
      _
    %p83 = scmp.eq.s32.totalorder 0, 0
    // Predicated region
    $region46: #{tpu_custom_call.1} parent=1 // pred_check
      %p84 = pneg %p83
    $region47: #{tpu_custom_call.1} parent=1 // pred_check_branch
      %86 = sbr.rel (%p84) target = $region49
    $region48: #{tpu_custom_call.1} parent=1 // pred_region
      %87 = vst [vmem:[#allocation2] sm:$0xff] 0.0
      %88 = vst [vmem:[#allocation2 + $0x8] sm:$0xff] 0.0
      %89 = vst [vmem:[#allocation2 + $0x10] sm:$0xff] 0.0
      %90 = vst [vmem:[#allocation2 + $0x18] sm:$0xff] 0.0
    $region49: #{tpu_custom_call.1} parent=1 // pred_fallthru
      _
    %v91 = vld [vmem:[#allocation2] sm:$0xff]
    %v92 = vld [vmem:[#allocation2 + $0x8] sm:$0xff]
    %v93 = vld [vmem:[#allocation2 + $0x10] sm:$0xff]
    %v94 = vld [vmem:[#allocation2 + $0x18] sm:$0xff]
    %v95 = vld [vmem:[#allocation3] sm:$0xf]
    %v96 = vld [vmem:[#allocation3 + $0x4] sm:$0xf]
    %v97 = vld [vmem:[#allocation3 + $0x8] sm:$0xf]
    %v98 = vld [vmem:[#allocation3 + $0xc] sm:$0xf]
    %v99 = vld [vmem:[%s1] sm:$0xf]
    %v100 = vld [vmem:[%s1 + $0x4] sm:$0xf]
    %v101 = vld [vmem:[%s1 + $0x8] sm:$0xf]
    %v102 = vld [vmem:[%s1 + $0xc] sm:$0xf]
    %v103 = vld [vmem:[%s1 + $0x10] sm:$0xf]
    %v104 = vld [vmem:[%s1 + $0x14] sm:$0xf]
    %v105 = vld [vmem:[%s1 + $0x18] sm:$0xf]
    %v106 = vld [vmem:[%s1 + $0x1c] sm:$0xf]
    %v111 = vunpack.c.l.b16 %v95
    %v112 = vunpack.c.l.b16 %v96
    %v113 = vunpack.c.l.b16 %v97
    %v114 = vunpack.c.l.b16 %v98
    %v115 = vpack.c.b16 %v112, %v111
    %v116 = vpack.c.b16 %v114, %v113
    %v125 = vunpack.c.l.b16 %v99
    %v126 = vunpack.c.l.b16 %v100
    %v127 = vunpack.c.l.b16 %v101
    %v128 = vunpack.c.l.b16 %v102
    %v129 = vunpack.c.l.b16 %v103
    %v130 = vunpack.c.l.b16 %v104
    %v131 = vunpack.c.l.b16 %v105
    %v132 = vunpack.c.l.b16 %v106
    %v133 = vpack.c.b16 %v126, %v125
    %v134 = vpack.c.b16 %v128, %v127
    %v135 = vpack.c.b16 %v130, %v129
    %v136 = vpack.c.b16 %v132, %v131
    %vm141 = vcmask 523264
    %v143 = vsel %vm141, %v115, 0
    %v146 = vsel %vm141, %v116, 0
    %148 = vmatprep.subr.bf16.mxu0 0
    %149 = vmatpush1.bf16.msra.mxu0 %v133
    %150 = vmatprep.subr.bf16.mxu0 0
    %151 = vmatpush1.bf16.msra.mxu0 %v134
    %152 = vmatprep.subr.bf16.mxu0 0
    %153 = vmatpush1.bf16.msra.mxu0 %v135
    %154 = vmatprep.subr.bf16.mxu0 0
    %155 = vmatpush1.bf16.msra.mxu0 %v136
    %156 = vmatprep.subr.bf16.mxu0 0
    %157 = vmatpush1.bf16.msra.mxu0 0
    %158 = vmatprep.subr.bf16.mxu0 0
    %159 = vmatpush1.bf16.msra.mxu0 0
    %160 = vmatprep.subr.bf16.mxu0 0
    %161 = vmatpush1.bf16.msra.mxu0 0
    %162 = vmatprep.subr.bf16.mxu0 0
    %163 = vmatpush1.bf16.msra.mxu0 0
    %164 = vmatprep.subr.bf16.mxu0 0
    %165 = vmatpush1.bf16.msra.mxu0 0
    %166 = vmatprep.subr.bf16.mxu0 0
    %167 = vmatpush1.bf16.msra.mxu0 0
    %168 = vmatprep.subr.bf16.mxu0 0
    %169 = vmatpush1.bf16.msra.mxu0 0
    %170 = vmatprep.subr.bf16.mxu0 0
    %171 = vmatpush1.bf16.msra.mxu0 0
    %172 = vmatprep.subr.bf16.mxu0 0
    %173 = vmatpush1.bf16.msra.mxu0 0
    %174 = vmatprep.subr.bf16.mxu0 0
    %175 = vmatpush1.bf16.msra.mxu0 0
    %176 = vmatprep.subr.bf16.mxu0 0
    %177 = vmatpush1.bf16.msra.mxu0 0
    %178 = vmatprep.subr.bf16.mxu0 0
    %179 = vmatpush1.bf16.msra.mxu0 0
    %180 = vmatprep.mubr.bf16.mxu0 0
    %181 = vmatmul.mubr.bf16.gmra.mrb[0].mxu0 %v143
    %v182 = vpop.f32.mrb[0].mxu0
    %v183 = vadd.f32 0.0, %v182
    %v184 = vpop.f32.mrb[0].mxu0
    %v185 = vpop.f32.mrb[0].mxu0
    %v186 = vadd.f32 0.0, %v185
    %v187 = vpop.f32.mrb[0].mxu0
    %188 = vmatprep.mubr.bf16.mxu0 0
    %189 = vmatmul.mubr.bf16.gmra.mrb[0].mxu0 %v146
    %v190 = vpop.f32.mrb[0].mxu0
    %v191 = vadd.f32 0.0, %v190
    %v192 = vpop.f32.mrb[0].mxu0
    %v193 = vpop.f32.mrb[0].mxu0
    %v194 = vadd.f32 0.0, %v193
    %v195 = vpop.f32.mrb[0].mxu0
    %196 = vdwg.mxu0
    %v197 = vadd.f32 %v91, %v183
    %v198 = vadd.f32 %v92, %v186
    %v199 = vadd.f32 %v93, %v191
    %v200 = vadd.f32 %v94, %v194
    %201 = vst [vmem:[#allocation2] sm:$0xff] %v197
    %202 = vst [vmem:[#allocation2 + $0x8] sm:$0xff] %v198
    %203 = vst [vmem:[#allocation2 + $0x10] sm:$0xff] %v199
    %204 = vst [vmem:[#allocation2 + $0x18] sm:$0xff] %v200
    // Predicated region
    $region50: #{tpu_custom_call.1} parent=1 // pred_check
      %p205 = pneg %p83
    $region51: #{tpu_custom_call.1} parent=1 // pred_check_branch
      %207 = sbr.rel (%p205) target = $region53
    $region52: #{tpu_custom_call.1} parent=1 // pred_region
      %v208 = vld [vmem:[#allocation2] sm:$0xff]
      %v209 = vld [vmem:[#allocation2 + $0x8] sm:$0xff]
      %v210 = vld [vmem:[#allocation2 + $0x10] sm:$0xff]
      %v211 = vld [vmem:[#allocation2 + $0x18] sm:$0xff]
      %v212 = vld [vmem:[%s3] sm:$0xff]
      %v213 = vld [vmem:[%s3 + $0x8] sm:$0xff]
      %v214 = vld [vmem:[%s3 + $0x10] sm:$0xff]
      %v215 = vld [vmem:[%s3 + $0x18] sm:$0xff]
      %217 = vset.pattern.permute.xlu0 0
      %218 = vperm.xlu0 %217, %v212
      %v219 = vpop.permute.xlu0 %218
      %222 = vset.pattern.permute.xlu0 0
      %223 = vperm.xlu0 %222, %v213
      %v224 = vpop.permute.xlu0 %223
      %227 = vset.pattern.permute.xlu0 0
      %228 = vperm.xlu0 %227, %v214
      %v229 = vpop.permute.xlu0 %228
      %232 = vset.pattern.permute.xlu0 0
      %233 = vperm.xlu0 %232, %v215
      %v234 = vpop.permute.xlu0 %233
      %v236 = vmul.f32 %v208, %v219
      %v237 = vmul.f32 %v209, %v224
      %v238 = vmul.f32 %v210, %v229
      %v239 = vmul.f32 %v211, %v234
      %v240 = vpack.c.bf16 %v237, %v236
      %v241 = vpack.c.bf16 %v239, %v238
      %v242 = vld [vmem:[#allocation8] sm:$0xf]
      %v243 = vld [vmem:[#allocation8 + $0x4] sm:$0xf]
      %v244 = vld [vmem:[#allocation8 + $0x8] sm:$0xf]
      %v245 = vld [vmem:[#allocation8 + $0xc] sm:$0xf]
      %v246 = vld [vmem:[#allocation8 + $0x10] sm:$0xf]
      %v247 = vld [vmem:[#allocation8 + $0x14] sm:$0xf]
      %v248 = vld [vmem:[#allocation8 + $0x18] sm:$0xf]
      %v249 = vld [vmem:[#allocation8 + $0x1c] sm:$0xf]
      %v250 = vld [vmem:[#allocation8 + $0x20] sm:$0xf]
      %v251 = vld [vmem:[#allocation8 + $0x24] sm:$0xf]
      %v252 = vld [vmem:[#allocation8 + $0x28] sm:$0xf]
      %v253 = vld [vmem:[#allocation8 + $0x2c] sm:$0xf]
      %v254 = vld [vmem:[#allocation8 + $0x30] sm:$0xf]
      %v255 = vld [vmem:[#allocation8 + $0x34] sm:$0xf]
      %v256 = vld [vmem:[#allocation8 + $0x38] sm:$0xf]
      %v257 = vld [vmem:[#allocation8 + $0x3c] sm:$0xf]
      %v258 = vld [vmem:[#allocation6] sm:$0xf]
      %v259 = vld [vmem:[#allocation6 + $0x4] sm:$0xf]
      %v260 = vld [vmem:[#allocation6 + $0x8] sm:$0xf]
      %v261 = vld [vmem:[#allocation6 + $0xc] sm:$0xf]
      %v262 = vld [vmem:[#allocation9] sm:$0xf]
      %v263 = vld [vmem:[#allocation9 + $0x4] sm:$0xf]
      %v264 = vld [vmem:[#allocation9 + $0x8] sm:$0xf]
      %v265 = vld [vmem:[#allocation9 + $0xc] sm:$0xf]
      %v266 = vld [vmem:[#allocation9 + $0x10] sm:$0xf]
      %v267 = vld [vmem:[#allocation9 + $0x14] sm:$0xf]
      %v268 = vld [vmem:[#allocation9 + $0x18] sm:$0xf]
      %v269 = vld [vmem:[#allocation9 + $0x1c] sm:$0xf]
      %v270 = vld [vmem:[#allocation9 + $0x20] sm:$0xf]
      %v271 = vld [vmem:[#allocation9 + $0x24] sm:$0xf]
      %v272 = vld [vmem:[#allocation9 + $0x28] sm:$0xf]
      %v273 = vld [vmem:[#allocation9 + $0x2c] sm:$0xf]
      %v274 = vld [vmem:[#allocation9 + $0x30] sm:$0xf]
      %v275 = vld [vmem:[#allocation9 + $0x34] sm:$0xf]
      %v276 = vld [vmem:[#allocation9 + $0x38] sm:$0xf]
      %v277 = vld [vmem:[#allocation9 + $0x3c] sm:$0xf]
      %v282 = vunpack.c.l.b16 %v258
      %v283 = vunpack.c.l.b16 %v259
      %v284 = vunpack.c.l.b16 %v260
      %v285 = vunpack.c.l.b16 %v261
      %v286 = vpack.c.b16 %v283, %v282
      %v287 = vpack.c.b16 %v285, %v284
      %v306 = vunpack.c.l.b16 %v262
      %v307 = vunpack.c.l.b16 %v263
      %v308 = vunpack.c.l.b16 %v264
      %v309 = vunpack.c.l.b16 %v265
      %v310 = vunpack.c.l.b16 %v266
      %v311 = vunpack.c.l.b16 %v267
      %v312 = vunpack.c.l.b16 %v268
      %v313 = vunpack.c.l.b16 %v269
      %v314 = vunpack.c.l.b16 %v270
      %v315 = vunpack.c.l.b16 %v271
      %v316 = vunpack.c.l.b16 %v272
      %v317 = vunpack.c.l.b16 %v273
      %v318 = vunpack.c.l.b16 %v274
      %v319 = vunpack.c.l.b16 %v275
      %v320 = vunpack.c.l.b16 %v276
      %v321 = vunpack.c.l.b16 %v277
      %v322 = vpack.c.b16 %v307, %v306
      %v323 = vpack.c.b16 %v309, %v308
      %v324 = vpack.c.b16 %v311, %v310
      %v325 = vpack.c.b16 %v313, %v312
      %v326 = vpack.c.b16 %v315, %v314
      %v327 = vpack.c.b16 %v317, %v316
      %v328 = vpack.c.b16 %v319, %v318
      %v329 = vpack.c.b16 %v321, %v320
      %338 = vmatprep.subr.bf16.mxu0 0
      %339 = vmatpush1.bf16.msra.mxu0 %v322
      %340 = vmatprep.subr.bf16.mxu0 0
      %341 = vmatpush1.bf16.msra.mxu0 %v323
      %342 = vmatprep.subr.bf16.mxu0 0
      %343 = vmatpush1.bf16.msra.mxu0 %v324
      %344 = vmatprep.subr.bf16.mxu0 0
      %345 = vmatpush1.bf16.msra.mxu0 %v325
      %346 = vmatprep.subr.bf16.mxu0 0
      %347 = vmatpush1.bf16.msra.mxu0 %v326
      %348 = vmatprep.subr.bf16.mxu0 0
      %349 = vmatpush1.bf16.msra.mxu0 %v327
      %350 = vmatprep.subr.bf16.mxu0 0
      %351 = vmatpush1.bf16.msra.mxu0 %v328
      %352 = vmatprep.subr.bf16.mxu0 0
      %353 = vmatpush1.bf16.msra.mxu0 %v329
      %354 = vmatprep.subr.bf16.mxu0 0
      %355 = vmatpush1.bf16.msra.mxu0 0
      %356 = vmatprep.subr.bf16.mxu0 0
      %357 = vmatpush1.bf16.msra.mxu0 0
      %358 = vmatprep.subr.bf16.mxu0 0
      %359 = vmatpush1.bf16.msra.mxu0 0
      %360 = vmatprep.subr.bf16.mxu0 0
      %361 = vmatpush1.bf16.msra.mxu0 0
      %362 = vmatprep.subr.bf16.mxu0 0
      %363 = vmatpush1.bf16.msra.mxu0 0
      %364 = vmatprep.subr.bf16.mxu0 0
      %365 = vmatpush1.bf16.msra.mxu0 0
      %366 = vmatprep.subr.bf16.mxu0 0
      %367 = vmatpush1.bf16.msra.mxu0 0
      %368 = vmatprep.subr.bf16.mxu0 0
      %369 = vmatpush1.bf16.msra.mxu0 0
      %370 = vmatprep.mubr.bf16.mxu0 0
      %371 = vmatmul.mubr.bf16.gmra.mrb[0].mxu0 %v286
      %v372 = vpop.f32.mrb[0].mxu0
      %v373 = vadd.f32 0.0, %v372
      %v374 = vpop.f32.mrb[0].mxu0
      %v375 = vpop.f32.mrb[0].mxu0
      %v376 = vadd.f32 0.0, %v375
      %v377 = vpop.f32.mrb[0].mxu0
      %378 = vmatprep.mubr.bf16.mxu0 0
      %379 = vmatmul.mubr.bf16.gmra.mrb[0].mxu0 %v287
      %v380 = vpop.f32.mrb[0].mxu0
      %v381 = vadd.f32 0.0, %v380
      %v382 = vpop.f32.mrb[0].mxu0
      %v383 = vpop.f32.mrb[0].mxu0
      %v384 = vadd.f32 0.0, %v383
      %v385 = vpop.f32.mrb[0].mxu0
      %386 = vdwg.mxu0
      %v403 = vunpack.c.l.b16 %v242
      %v404 = vunpack.c.l.b16 %v243
      %v405 = vunpack.c.l.b16 %v244
      %v406 = vunpack.c.l.b16 %v245
      %v407 = vunpack.c.l.b16 %v246
      %v408 = vunpack.c.l.b16 %v247
      %v409 = vunpack.c.l.b16 %v248
      %v410 = vunpack.c.l.b16 %v249
      %v411 = vunpack.c.l.b16 %v250
      %v412 = vunpack.c.l.b16 %v251
      %v413 = vunpack.c.l.b16 %v252
      %v414 = vunpack.c.l.b16 %v253
      %v415 = vunpack.c.l.b16 %v254
      %v416 = vunpack.c.l.b16 %v255
      %v417 = vunpack.c.l.b16 %v256
      %v418 = vunpack.c.l.b16 %v257
      %v419 = vpack.c.b16 %v404, %v403
      %v420 = vpack.c.b16 %v406, %v405
      %v421 = vpack.c.b16 %v408, %v407
      %v422 = vpack.c.b16 %v410, %v409
      %v423 = vpack.c.b16 %v412, %v411
      %v424 = vpack.c.b16 %v414, %v413
      %v425 = vpack.c.b16 %v416, %v415
      %v426 = vpack.c.b16 %v418, %v417
      %435 = vmatprep.subr.bf16.mxu0 0
      %436 = vmatpush1.bf16.msra.mxu0 %v419
      %437 = vmatprep.subr.bf16.mxu0 0
      %438 = vmatpush1.bf16.msra.mxu0 %v420
      %439 = vmatprep.subr.bf16.mxu0 0
      %440 = vmatpush1.bf16.msra.mxu0 %v421
      %441 = vmatprep.subr.bf16.mxu0 0
      %442 = vmatpush1.bf16.msra.mxu0 %v422
      %443 = vmatprep.subr.bf16.mxu0 0
      %444 = vmatpush1.bf16.msra.mxu0 %v423
      %445 = vmatprep.subr.bf16.mxu0 0
      %446 = vmatpush1.bf16.msra.mxu0 %v424
      %447 = vmatprep.subr.bf16.mxu0 0
      %448 = vmatpush1.bf16.msra.mxu0 %v425
      %449 = vmatprep.subr.bf16.mxu0 0
      %450 = vmatpush1.bf16.msra.mxu0 %v426
      %451 = vmatprep.subr.bf16.mxu0 0
      %452 = vmatpush1.bf16.msra.mxu0 0
      %453 = vmatprep.subr.bf16.mxu0 0
      %454 = vmatpush1.bf16.msra.mxu0 0
      %455 = vmatprep.subr.bf16.mxu0 0
      %456 = vmatpush1.bf16.msra.mxu0 0
      %457 = vmatprep.subr.bf16.mxu0 0
      %458 = vmatpush1.bf16.msra.mxu0 0
      %459 = vmatprep.subr.bf16.mxu0 0
      %460 = vmatpush1.bf16.msra.mxu0 0
      %461 = vmatprep.subr.bf16.mxu0 0
      %462 = vmatpush1.bf16.msra.mxu0 0
      %463 = vmatprep.subr.bf16.mxu0 0
      %464 = vmatpush1.bf16.msra.mxu0 0
      %465 = vmatprep.subr.bf16.mxu0 0
      %466 = vmatpush1.bf16.msra.mxu0 0
      %467 = vmatprep.mubr.bf16.mxu0 0
      %468 = vmatmul.mubr.bf16.gmra.mrb[0].mxu0 %v240
      %v469 = vpop.f32.mrb[0].mxu0
      %v470 = vadd.f32 %v373, %v469
      %v471 = vpop.f32.mrb[0].mxu0
      %v472 = vpop.f32.mrb[0].mxu0
      %v473 = vadd.f32 %v376, %v472
      %v474 = vpop.f32.mrb[0].mxu0
      %475 = vmatprep.mubr.bf16.mxu0 0
      %476 = vmatmul.mubr.bf16.gmra.mrb[0].mxu0 %v241
      %v477 = vpop.f32.mrb[0].mxu0
      %v478 = vadd.f32 %v381, %v477
      %v479 = vpop.f32.mrb[0].mxu0
      %v480 = vpop.f32.mrb[0].mxu0
      %v481 = vadd.f32 %v384, %v480
      %v482 = vpop.f32.mrb[0].mxu0
      %483 = vdwg.mxu0
      %v484 = vld [vmem:[%s6] sm:$0x1]
      %v486 = vlaneseq
      %v487 = vshrl.u32 %v486, 7
      %v488 = vsub.s32 0, %v487
      %v489 = vrot.slane %v484, %v488
      %v491 = vadd.f32 %v470, %v489
      %v492 = vadd.f32 %v473, %v489
      %v493 = vadd.f32 %v478, %v489
      %v494 = vadd.f32 %v481, %v489
      %v495 = vmax.f32 %v491, 0.0
      %v496 = vmax.f32 %v492, 0.0
      %v497 = vmax.f32 %v493, 0.0
      %v498 = vmax.f32 %v494, 0.0
      %499 = vst [vmem:[#allocation11] sm:$0xff] %v495
      %500 = vst [vmem:[#allocation11 + $0x8] sm:$0xff] %v496
      %501 = vst [vmem:[#allocation11 + $0x10] sm:$0xff] %v497
      %502 = vst [vmem:[#allocation11 + $0x18] sm:$0xff] %v498
    $region53: #{tpu_custom_call.1} parent=1 // pred_fallthru
      _
    // Predicated region
    $region54: #{tpu_custom_call.1} parent=1 // pred_check
      _
    $region55: #{tpu_custom_call.1} parent=1 // pred_check_branch
      %504 = sbr.rel (0) target = $region57
    $region56: #{tpu_custom_call.1} parent=1 // pred_region
      %s506 = ssub.s32 512, 512
      %507 = vsyncadd [#allocation5], %s506
      %s508 = sshll.u32 [#allocation11], 4
      %s509 = int_to_ptr.vmem [resolvable:$true] %s508
      %514 = dma.vmem_to_hbm [thread:$0]  %s509, 512, %s7, [#allocation5], 128, 128, 8
    $region57: #{tpu_custom_call.1} parent=1 // pred_fallthru
      _
    // Predicated region
    $region58: #{tpu_custom_call.1} parent=1 // pred_check
      _
    $region59: #{tpu_custom_call.1} parent=1 // pred_check_branch
      %516 = sbr.rel (0) target = $region61
    $region60: #{tpu_custom_call.1} parent=1 // pred_region
      %517 = dma.done [#allocation5], 512
    $region61: #{tpu_custom_call.1} parent=1 // pred_fallthru
      _
    %518 = vsyncpa [#allocation4], 1
    %519 = vsyncpa [#allocation7], 1
    %520 = vsyncpa [#allocation10], 1
    %521 = vsyncpa [#allocation5], 1

</llo_original>
